<compile_context>
chip_gen: v7x
topology: tpu7x:2x2x1
jax: 0.10.0
libtpu: 0.0.40
codegen_flags: <defaults>
</compile_context>

<pallas_src>
import numpy as np
import jax
import jax.numpy as jnp
from jax.experimental import pallas as pl
from jax.experimental.pallas import tpu as pltpu


# ----------------------------------------------------------------------------
# generation-aware budgets & tiling
# ----------------------------------------------------------------------------
def _round_up(x, m):
    return ((x + m - 1) // m) * m


def _vmem_budgets():
    """(vmem_limit_bytes, per-step streamed-bytes budget) per TPU generation.

    Conservative default assumes 64 MiB VMEM per TensorCore (v7x); 128 MiB
    parts (v5e / v6e) get much larger budgets so row tiles reach the HBM
    roofline (~85% at >=512-row tiles per measured data).
    """
    vmem_cap = 64 * 1024 * 1024
    try:
        vmem_cap = int(pltpu.get_tpu_info().vmem_capacity_bytes)
    except Exception:
        pass
    if vmem_cap >= 128 * 1024 * 1024:                 # v5e / v6e
        return 96 * 1024 * 1024, 72 * 1024 * 1024
    return 44 * 1024 * 1024, 20 * 1024 * 1024          # v7x (64 MiB / TC)


def _plan_row_tiles(nrows, feat, itemsize, stream_budget, n_chunks=1):
    """Pick (tile_rows, n_chunks, padded_rows) for streaming [nrows, feat] pairs.

    Bytes per grid step ~= two double-buffered input streams plus ~8 live f32
    full-tile temporaries.  Prefers tile sizes that divide nrows exactly so no
    jnp.pad HBM copy is ever materialized; zero-padding is a rare fallback
    (callers mask / slice the tail exactly in that case).
    """
    per_row = feat * (2 * 2 * itemsize + 8 * 4)
    cap = max(8, int(stream_budget // max(per_row, 1)))
    cap -= cap % 8
    aligns = (32, 8) if itemsize < 4 else (8,)         # packed-sublane friendly

    def best_divisor(chunks, limit):
        for align in aligns:
            if limit < align or nrows % (chunks * align):
                continue
            t = (limit // align) * align
            while t >= align:
                if nrows % (chunks * t) == 0:
                    return t
                t -= align
        return None

    for chunks in range(n_chunks, 0, -1):
        limit = min(cap, nrows // chunks) if nrows >= chunks else 0
        t = best_divisor(chunks, limit)
        if t is not None and t >= min(128, limit):      # reject degenerate tiny tiles
            return t, chunks, nrows
    if nrows <= cap:                                    # small arrays: one full tile
        return nrows, 1, nrows
    t = cap                                             # rare fallback: pad
    return t, n_chunks, _round_up(nrows, n_chunks * t)


# ----------------------------------------------------------------------------
# in-kernel math helpers (all f32)
# ----------------------------------------------------------------------------
def _softmax_rows(x_raw, center, inv_t):
    t = (x_raw - center) * inv_t
    t = t - jnp.max(t, axis=-1, keepdims=True)
    e = jnp.exp(t)
    return e * pl.reciprocal(jnp.sum(e, axis=-1, keepdims=True), approx=False)


def _cross_entropy_rows(p, s_raw, inv_s):
    """sum(-p * log_softmax(s_raw * inv_s), -1) -> (rows, 1) f32."""
    s = s_raw * inv_s
    s = s - jnp.max(s, axis=-1, keepdims=True)
    log_z = jnp.log(jnp.sum(jnp.exp(s), axis=-1, keepdims=True))
    return jnp.sum(p * (log_z - s), axis=-1, keepdims=True)


# ----------------------------------------------------------------------------
# Pallas kernels
# ----------------------------------------------------------------------------
def _make_cls_kernel(tile_b, valid_b, needs_mask):
    def kernel(vtbl_ref, temps_ref, t_ref, c_ref, s_ref, o_ref, p_ref):
        del vtbl_ref                      # consumed by the index_maps only
        j = pl.program_id(2)              # student-crop index (innermost axis)

        @pl.when(j == 0)
        def _new_teacher_tile():
            # Teacher softmax computed once per (crop q, batch tile r); the
            # teacher block is resident across j, so it is read from HBM once
            # and its exp work is not repeated for the N-1 student crops.
            p_ref[...] = _softmax_rows(t_ref[0].astype(jnp.float32),
                                       c_ref[...].astype(jnp.float32),
                                       temps_ref[0])
            o_ref[...] = jnp.zeros_like(o_ref)

        ce = _cross_entropy_rows(p_ref[...],
                                 s_ref[0].astype(jnp.float32),
                                 temps_ref[1])            # (tile_b, 1)
        if needs_mask:   # only generated on the rare padded-batch fallback
            row = (pl.program_id(1) * tile_b
                   + jax.lax.broadcasted_iota(jnp.int32, (tile_b, 1), 0))
            ce = jnp.where(row < valid_b, ce, 0.0)
        # Scalar accumulation: no per-row CLS writeback at all.
        o_ref[...] += jnp.sum(ce)

    return kernel


def _patch_ce_colsum_kernel(temps_ref, t_ref, c_ref, s_ref, ce_ref, sum_ref):
    t_raw = t_ref[...].astype(jnp.float32)                # (tile_rows, P)

    # Fused center2 statistics: raw teacher column-sum accumulated in the
    # resident (1, 1, P) block owned by this core-chunk (no cross-core race).
    @pl.when(pl.program_id(1) == 0)
    def _init():
        sum_ref[...] = jnp.zeros_like(sum_ref)

    sum_ref[...] += jnp.sum(t_raw, axis=0, keepdims=True)[None]

    p = _softmax_rows(t_raw, c_ref[...].astype(jnp.float32), temps_ref[0])
    ce_ref[...] = _cross_entropy_rows(p, s_ref[...].astype(jnp.float32),
                                      temps_ref[1])


# ----------------------------------------------------------------------------
# pallas_call wrappers
# ----------------------------------------------------------------------------
def cls_pair_loss_sums(vtbl, temps, t_cls, center, s_cls, stream_budget, vmem_limit):
    """Accumulated CE sums for every off-diagonal (teacher q, student v) pair.

    t_cls: (G, B, D), s_cls: (N, B, D), vtbl: (G, N-1) int32 student indices.
    Returns (G, b_tiles) f32 partial sums; sum()/(G*(N-1)*B) is the CLS loss.
    """
    G, B, D = t_cls.shape
    n_student = vtbl.shape[1]
    itemsize = max(t_cls.dtype.itemsize, s_cls.dtype.itemsize)
    tile_b, _, b_pad = _plan_row_tiles(B, D, itemsize, stream_budget, n_chunks=1)
    needs_mask = b_pad != B
    if needs_mask:                                   # rare fallback only
        t_cls = jnp.pad(t_cls, ((0, 0), (0, b_pad - B), (0, 0)))
        s_cls = jnp.pad(s_cls, ((0, 0), (0, b_pad - B), (0, 0)))
    b_tiles = b_pad // tile_b

    out = pl.pallas_call(
        _make_cls_kernel(tile_b, B, needs_mask),
        out_shape=jax.ShapeDtypeStruct((G, b_tiles, 1, 128), jnp.float32),
        grid_spec=pltpu.PrefetchScalarGridSpec(
            num_scalar_prefetch=1,
            grid=(G, b_tiles, n_student),            # student crop innermost
            in_specs=[
                pl.BlockSpec(memory_space=pltpu.MemorySpace.SMEM),               # temps
                pl.BlockSpec((1, tile_b, D), lambda q, r, j, tbl: (q, r, 0)),     # teacher (resident over j)
                pl.BlockSpec((1, D), lambda q, r, j, tbl: (0, 0)),                # center
                pl.BlockSpec((1, tile_b, D), lambda q, r, j, tbl: (tbl[q, j], r, 0)),  # student
            ],
            out_specs=pl.BlockSpec((1, 1, 1, 128), lambda q, r, j, tbl: (q, r, 0, 0)),
            scratch_shapes=[pltpu.VMEM((tile_b, D), jnp.float32)],               # teacher softmax
        ),
        compiler_params=pltpu.CompilerParams(
            dimension_semantics=("parallel", "parallel", "arbitrary"),
            vmem_limit_bytes=vmem_limit),
    )(vtbl, temps, t_cls, center, s_cls)
    return out[:, :, 0, 0]


def patch_ce_and_colsum(temps, t_rows, center2_row, s_rows, stream_budget, vmem_limit):
    """Per-row patch CE plus the fused raw-teacher column sum (for center2).

    t_rows / s_rows: (R, P) flattened patch logits.  Returns ((R,) f32, (1, P) f32).
    Grid = (core-chunk "parallel", row-tile "arbitrary"): the outer axis lets
    v7x run the dominant kernel on both TensorCores; each chunk owns its own
    column-sum block.
    """
    R, P = t_rows.shape
    itemsize = max(t_rows.dtype.itemsize, s_rows.dtype.itemsize)
    tile_rows, n_chunks, r_pad = _plan_row_tiles(R, P, itemsize, stream_budget, n_chunks=2)
    if r_pad != R:
        # Rare fallback: zero rows keep the fused column-sum exact; their CE
        # rows are sliced off below.
        t_rows = jnp.pad(t_rows, ((0, r_pad - R), (0, 0)))
        s_rows = jnp.pad(s_rows, ((0, r_pad - R), (0, 0)))
    tiles_per_chunk = r_pad // (n_chunks * tile_rows)

    ce, colsum = pl.pallas_call(
        _patch_ce_colsum_kernel,
        out_shape=(jax.ShapeDtypeStruct((r_pad, 1), jnp.float32),
                   jax.ShapeDtypeStruct((n_chunks, 1, P), jnp.float32)),
        grid=(n_chunks, tiles_per_chunk),
        in_specs=[
            pl.BlockSpec(memory_space=pltpu.MemorySpace.SMEM),                   # temps
            pl.BlockSpec((tile_rows, P), lambda c, t: (c * tiles_per_chunk + t, 0)),
            pl.BlockSpec((1, P), lambda c, t: (0, 0)),
            pl.BlockSpec((tile_rows, P), lambda c, t: (c * tiles_per_chunk + t, 0)),
        ],
        out_specs=(pl.BlockSpec((tile_rows, 1), lambda c, t: (c * tiles_per_chunk + t, 0)),
                   pl.BlockSpec((1, 1, P), lambda c, t: (c, 0, 0))),
        compiler_params=pltpu.CompilerParams(
            dimension_semantics=("parallel", "arbitrary"),
            vmem_limit_bytes=vmem_limit),
    )(temps, t_rows, center2_row, s_rows)
    return ce[:R, 0], jnp.sum(colsum, axis=0)


# ----------------------------------------------------------------------------
# iBOTLoss (JAX / Pallas)
# ----------------------------------------------------------------------------
class IBOTLossPallas:
    def __init__(self, out_dim, patch_out_dim, ngcrops, nlcrops,
                 warmup_teacher_temp, teacher_temp,
                 warmup_teacher_temp2, teacher_temp2,
                 warmup_teacher_temp_epochs, nepochs,
                 student_temp=0.1, center_momentum=0.9, center_momentum2=0.9,
                 lambda1=1.0, lambda2=1.0, lambda3=1.0,
                 mim_start_epoch=0, n_cells=8):
        self.student_temp = student_temp
        self.center_momentum = center_momentum
        self.center_momentum2 = center_momentum2
        self.ngcrops = ngcrops
        self.nlcrops = nlcrops
        self.ncrops = ngcrops + nlcrops
        self.lambda1 = lambda1
        self.lambda2 = lambda2
        self.lambda3 = lambda3
        # buffers (same init as register_buffer zeros)
        self.center = jnp.zeros((1, out_dim), jnp.float32)
        self.center2 = jnp.zeros((1, 1, patch_out_dim), jnp.float32)

        self.teacher_temp_schedule = np.concatenate((
            np.linspace(warmup_teacher_temp, teacher_temp, warmup_teacher_temp_epochs),
            np.ones(nepochs - warmup_teacher_temp_epochs) * teacher_temp))
        if mim_start_epoch == 0:
            self.teacher_temp2_schedule = np.concatenate((
                np.linspace(warmup_teacher_temp2, teacher_temp2, warmup_teacher_temp_epochs),
                np.ones(nepochs - warmup_teacher_temp_epochs) * teacher_temp2))
        else:
            self.teacher_temp2_schedule = np.concatenate((
                np.ones(mim_start_epoch) * warmup_teacher_temp2,
                np.linspace(warmup_teacher_temp2, teacher_temp2, warmup_teacher_temp_epochs),
                np.ones(nepochs - warmup_teacher_temp_epochs - mim_start_epoch) * teacher_temp2))

        # vtbl[q, j] = j-th student crop v != q (table drives the index_maps).
        vtbl = np.asarray(
            [[v for v in range(self.ncrops) if v != q] for q in range(self.ngcrops)],
            dtype=np.int32)
        self._vtbl = jnp.asarray(vtbl)

        # generation-aware VMEM budgets, queried once.
        self._vmem_limit, self._stream_budget = _vmem_budgets()

        # One compiled forward for all epochs (temps are runtime SMEM scalars).
        self._forward = jax.jit(self._forward_impl)

    # pure / functional forward: returns losses and the updated centers
    def _forward_impl(self, student_cls, student_patch, teacher_cls, teacher_patch,
                      student_local_cls, student_mask, temps_cls, temps_patch,
                      center, center2):
        G, N = self.ngcrops, self.ncrops
        B = teacher_cls.shape[0] // G
        D = teacher_cls.shape[-1]
        T, P = student_patch.shape[1], student_patch.shape[2]

        if student_local_cls is not None:
            student_cls = jnp.concatenate([student_cls, student_local_cls], axis=0)

        # ------------------------- CLS term (q != v pairs) -------------------
        pair_sums = cls_pair_loss_sums(
            self._vtbl, temps_cls,
            teacher_cls.reshape(G, B, D), center, student_cls.reshape(N, B, D),
            self._stream_budget, self._vmem_limit)                     # (G, b_tiles)
        total_loss1 = pair_sums.sum() / (G * (N - 1) * B) * self.lambda1

        # ----------------------- patch / MIM term (q == v) -------------------
        ce2_rows, patch_colsum = patch_ce_and_colsum(
            temps_patch,
            teacher_patch.reshape(G * B * T, P),
            center2.reshape(1, P),
            student_patch.reshape(G * B * T, P),
            self._stream_budget, self._vmem_limit)
        ce2 = ce2_rows.reshape(G, B, T)
        half = T // 2
        loss2 = 0.5 * (ce2[..., :half] + ce2[..., half:])      # mean of the two tokens
        mask = student_mask.reshape(G, B, -1).astype(jnp.float32)
        loss2 = jnp.sum(loss2 * mask, axis=-1) / jnp.maximum(jnp.sum(mask, axis=-1), 1.0)
        total_loss2 = loss2.mean() * self.lambda2

        # --------------------------- protein loss ----------------------------
        # TODO(synk): ContrastiveLoss is not defined in the provided source; the
        # protein loss is returned as 0 rather than faking its semantics.
        protein_loss = jnp.zeros((), jnp.float32) * self.lambda3

        # ------------------------- center EMA updates ------------------------
        # dist.all_reduce with world_size == 1 is a no-op (single device).
        m1, m2 = self.center_momentum, self.center_momentum2
        cls_colsum = jnp.sum(teacher_cls.astype(jnp.float32), axis=0, keepdims=True)
        new_center = center * m1 + (cls_colsum / (G * B)) * (1.0 - m1)
        new_center2 = center2 * m2 + \
            (patch_colsum.reshape(1, 1, P) / (G * B * T)) * (1.0 - m2)

        total = total_loss1 + total_loss2 + protein_loss
        losses = dict(cls=total_loss1, patch=total_loss2,
                      protein_loss=protein_loss, loss=total)
        return losses, new_center, new_center2

    def __call__(self, student_output, teacher_output, student_local_cls,
                 student_mask, epoch, labels):
        student_cls, student_patch = student_output
        teacher_cls, teacher_patch = teacher_output
        temp = float(self.teacher_temp_schedule[epoch])
        temp2 = float(self.teacher_temp2_schedule[epoch])
        inv_s = 1.0 / float(self.student_temp)
        temps_cls = jnp.array([1.0 / temp, inv_s], jnp.float32)
        temps_patch = jnp.array([1.0 / temp2, inv_s], jnp.float32)

        losses, self.center, self.center2 = self._forward(
            student_cls, student_patch, teacher_cls, teacher_patch,
            student_local_cls, student_mask, temps_cls, temps_patch,
            self.center, self.center2)
        return losses


# ----------------------------------------------------------------------------
# main
# ----------------------------------------------------------------------------
if __name__ == "__main__":
    key = jax.random.PRNGKey(0)
    ks = jax.random.split(key, 7)

    B = 2                 # batch per crop
    out_dim = 32          # CLS head dim
    patch_out_dim = 32    # patch head dim
    ngcrops, nlcrops = 2, 2
    h = w = 2             # masked spatial grid
    T = 2 * h * w         # two tokens per spatial patch (matches the 0.5*(a+b) fold)

    student_cls = jax.random.normal(ks[0], (ngcrops * B, out_dim), jnp.float32)
    student_patch = jax.random.normal(ks[1], (ngcrops * B, T, patch_out_dim), jnp.float32)
    teacher_cls = jax.random.normal(ks[2], (ngcrops * B, out_dim), jnp.float32)
    teacher_patch = jax.random.normal(ks[3], (ngcrops * B, T, patch_out_dim), jnp.float32)
    student_local_cls = jax.random.normal(ks[4], (nlcrops * B, out_dim), jnp.float32)
    student_mask = jax.random.bernoulli(ks[5], 0.5, (ngcrops, B, h, w))
    labels = jax.random.randint(ks[6], (B, 4), 0, 8)   # unused (protein loss is TODO)

    ibot = IBOTLossPallas(
        out_dim=out_dim, patch_out_dim=patch_out_dim,
        ngcrops=ngcrops, nlcrops=nlcrops,
        warmup_teacher_temp=0.04, teacher_temp=0.07,
        warmup_teacher_temp2=0.04, teacher_temp2=0.07,
        warmup_teacher_temp_epochs=5, nepochs=10,
        student_temp=0.1, center_momentum=0.9, center_momentum2=0.9,
        lambda1=1.0, lambda2=1.0, lambda3=1.0)

    # epoch 0 and epoch 1 reuse the same compiled forward (temps are dynamic).
    losses = ibot((student_cls, student_patch), (teacher_cls, teacher_patch),
                  student_local_cls, student_mask, epoch=0, labels=labels)
    losses = ibot((student_cls, student_patch), (teacher_cls, teacher_patch),
                  student_local_cls, student_mask, epoch=1, labels=labels)

    jax.block_until_ready(losses["loss"])
    jax.block_until_ready(ibot.center)
    jax.block_until_ready(ibot.center2)
    print("KERNEL_OK")
</pallas_src>

<mosaic_0001>
module attributes {stable_mosaic.version = 11 : i64} {
  func.func @_patch_ce_colsum_kernel(%arg0: i32, %arg1: i32, %arg2: memref<2xf32, #tpu.memory_space<smem>>, %arg3: memref<16x32xf32, #tpu.memory_space<vmem>>, %arg4: memref<1x32xf32, #tpu.memory_space<vmem>>, %arg5: memref<16x32xf32, #tpu.memory_space<vmem>>, %arg6: memref<16x1xf32, #tpu.memory_space<vmem>>, %arg7: memref<1x1x32xf32, #tpu.memory_space<vmem>>) attributes {dimension_semantics = [#tpu.dimension_semantics<parallel>, #tpu.dimension_semantics<arbitrary>], iteration_bounds = array<i64: 2, 1>, scalar_prefetch = 0 : i64, scratch_operands = 0 : i64, tpu.core_type = #tpu.core_type<tc>, window_params = [{transform_indices = @transform_0, window_bounds = array<i64: 2>}, {transform_indices = @transform_1, window_bounds = array<i64: 16, 32>}, {pipeline_mode = #tpu.pipeline_mode<synchronous>, transform_indices = @transform_2, window_bounds = array<i64: 1, 32>}, {transform_indices = @transform_3, window_bounds = array<i64: 16, 32>}, {transform_indices = @transform_4, window_bounds = array<i64: 16, 1>}, {transform_indices = @transform_5, window_bounds = array<i64: 1, 1, 32>}]} {
    %c0 = arith.constant 0 : index
    %c0_0 = arith.constant 0 : index
    %0 = vector.load %arg3[%c0, %c0_0] : memref<16x32xf32, #tpu.memory_space<vmem>>, vector<16x32xf32>
    %c0_i32 = arith.constant 0 : i32
    %1 = arith.cmpi eq, %arg1, %c0_i32 : i32
    %2 = arith.extui %1 : i1 to i32
    %c0_i32_1 = arith.constant 0 : i32
    %3 = arith.cmpi ne, %2, %c0_i32_1 : i32
    scf.if %3 {
      %cst_20 = arith.constant 0.000000e+00 : f32
      %44 = vector.broadcast %cst_20 : f32 to vector<1x1x32xf32>
      %c0_21 = arith.constant 0 : index
      %c0_22 = arith.constant 0 : index
      %c0_23 = arith.constant 0 : index
      %45 = vector.load %arg7[%c0_21, %c0_22, %c0_23] : memref<1x1x32xf32, #tpu.memory_space<vmem>>, vector<1x1x32xf32>
      tpu.vector_store %arg7[%c0_21, %c0_22, %c0_23], %44 {strides = array<i32>} : memref<1x1x32xf32, #tpu.memory_space<vmem>>, vector<1x1x32xf32>,
    } else {
    }
    %c0_2 = arith.constant 0 : index
    %c0_3 = arith.constant 0 : index
    %c0_4 = arith.constant 0 : index
    %4 = vector.load %arg7[%c0_2, %c0_3, %c0_4] : memref<1x1x32xf32, #tpu.memory_space<vmem>>, vector<1x1x32xf32>
    %cst = arith.constant dense<0.000000e+00> : vector<32xf32>
    %5 = vector.multi_reduction <add>, %0, %cst [0] : vector<16x32xf32> to vector<32xf32>
    %6 = vector.shape_cast %5 : vector<32xf32> to vector<1x32xf32>
    %7 = vector.shape_cast %6 : vector<1x32xf32> to vector<1x1x32xf32>
    %8 = arith.addf %4, %7 : vector<1x1x32xf32>
    %c0_5 = arith.constant 0 : index
    %c0_6 = arith.constant 0 : index
    %c0_7 = arith.constant 0 : index
    %9 = vector.load %arg7[%c0_5, %c0_6, %c0_7] : memref<1x1x32xf32, #tpu.memory_space<vmem>>, vector<1x1x32xf32>
    tpu.vector_store %arg7[%c0_5, %c0_6, %c0_7], %8 {strides = array<i32>} : memref<1x1x32xf32, #tpu.memory_space<vmem>>, vector<1x1x32xf32>,
    %c0_8 = arith.constant 0 : index
    %c0_9 = arith.constant 0 : index
    %10 = vector.load %arg4[%c0_8, %c0_9] : memref<1x32xf32, #tpu.memory_space<vmem>>, vector<1x32xf32>
    %c0_10 = arith.constant 0 : index
    %11 = memref.load %arg2[%c0_10] : memref<2xf32, #tpu.memory_space<smem>>
    %12 = vector.broadcast %10 : vector<1x32xf32> to vector<16x32xf32>
    %13 = arith.subf %0, %12 : vector<16x32xf32>
    %14 = vector.broadcast %11 : f32 to vector<16x32xf32>
    %15 = arith.mulf %13, %14 : vector<16x32xf32>
    %cst_11 = arith.constant dense<0xFF800000> : vector<16xf32>
    %16 = vector.multi_reduction <maximumf>, %15, %cst_11 [1] : vector<16x32xf32> to vector<16xf32>
    %17 = vector.shape_cast %16 : vector<16xf32> to vector<16x1xf32>
    %18 = vector.broadcast %17 : vector<16x1xf32> to vector<16x32xf32>
    %19 = arith.subf %15, %18 : vector<16x32xf32>
    %20 = math.exp %19 : vector<16x32xf32>
    %cst_12 = arith.constant dense<0.000000e+00> : vector<16xf32>
    %21 = vector.multi_reduction <add>, %20, %cst_12 [1] : vector<16x32xf32> to vector<16xf32>
    %22 = vector.shape_cast %21 : vector<16xf32> to vector<16x1xf32>
    %23 = tpu.reciprocal %22 : vector<16x1xf32> -> vector<16x1xf32>
    %24 = vector.broadcast %23 : vector<16x1xf32> to vector<16x32xf32>
    %25 = arith.mulf %20, %24 : vector<16x32xf32>
    %c0_13 = arith.constant 0 : index
    %c0_14 = arith.constant 0 : index
    %26 = vector.load %arg5[%c0_13, %c0_14] : memref<16x32xf32, #tpu.memory_space<vmem>>, vector<16x32xf32>
    %c1 = arith.constant 1 : index
    %27 = memref.load %arg2[%c1] : memref<2xf32, #tpu.memory_space<smem>>
    %28 = vector.broadcast %27 : f32 to vector<16x32xf32>
    %29 = arith.mulf %26, %28 : vector<16x32xf32>
    %cst_15 = arith.constant dense<0xFF800000> : vector<16xf32>
    %30 = vector.multi_reduction <maximumf>, %29, %cst_15 [1] : vector<16x32xf32> to vector<16xf32>
    %31 = vector.shape_cast %30 : vector<16xf32> to vector<16x1xf32>
    %32 = vector.broadcast %31 : vector<16x1xf32> to vector<16x32xf32>
    %33 = arith.subf %29, %32 : vector<16x32xf32>
    %34 = math.exp %33 : vector<16x32xf32>
    %cst_16 = arith.constant dense<0.000000e+00> : vector<16xf32>
    %35 = vector.multi_reduction <add>, %34, %cst_16 [1] : vector<16x32xf32> to vector<16xf32>
    %36 = vector.shape_cast %35 : vector<16xf32> to vector<16x1xf32>
    %37 = math.log %36 : vector<16x1xf32>
    %38 = vector.broadcast %37 : vector<16x1xf32> to vector<16x32xf32>
    %39 = arith.subf %38, %33 : vector<16x32xf32>
    %40 = arith.mulf %25, %39 : vector<16x32xf32>
    %cst_17 = arith.constant dense<0.000000e+00> : vector<16xf32>
    %41 = vector.multi_reduction <add>, %40, %cst_17 [1] : vector<16x32xf32> to vector<16xf32>
    %42 = vector.shape_cast %41 : vector<16xf32> to vector<16x1xf32>
    %c0_18 = arith.constant 0 : index
    %c0_19 = arith.constant 0 : index
    %43 = vector.load %arg6[%c0_18, %c0_19] : memref<16x1xf32, #tpu.memory_space<vmem>>, vector<16x1xf32>
    tpu.vector_store %arg6[%c0_18, %c0_19], %42 {strides = array<i32>} : memref<16x1xf32, #tpu.memory_space<vmem>>, vector<16x1xf32>,
    return
  }
  func.func @transform_0(%arg0: i32, %arg1: i32) -> i32 {
    %c0_i32 = arith.constant 0 : i32
    %c0_i32_0 = arith.constant 0 : i32
    return %c0_i32 : i32
  }
  func.func @transform_1(%arg0: i32, %arg1: i32) -> (i32, i32) {
    %c1_i32 = arith.constant 1 : i32
    %0 = arith.muli %arg0, %c1_i32 : i32
    %1 = arith.addi %0, %arg1 : i32
    %c0_i32 = arith.constant 0 : i32
    %c0_i32_0 = arith.constant 0 : i32
    return %1, %c0_i32 : i32, i32
  }
  func.func @transform_2(%arg0: i32, %arg1: i32) -> (i32, i32) {
    %c0_i32 = arith.constant 0 : i32
    %c0_i32_0 = arith.constant 0 : i32
    %c0_i32_1 = arith.constant 0 : i32
    return %c0_i32, %c0_i32_0 : i32, i32
  }
  func.func @transform_3(%arg0: i32, %arg1: i32) -> (i32, i32) {
    %c1_i32 = arith.constant 1 : i32
    %0 = arith.muli %arg0, %c1_i32 : i32
    %1 = arith.addi %0, %arg1 : i32
    %c0_i32 = arith.constant 0 : i32
    %c0_i32_0 = arith.constant 0 : i32
    return %1, %c0_i32 : i32, i32
  }
  func.func @transform_4(%arg0: i32, %arg1: i32) -> (i32, i32) {
    %c1_i32 = arith.constant 1 : i32
    %0 = arith.muli %arg0, %c1_i32 : i32
    %1 = arith.addi %0, %arg1 : i32
    %c0_i32 = arith.constant 0 : i32
    %c0_i32_0 = arith.constant 0 : i32
    return %1, %c0_i32 : i32, i32
  }
  func.func @transform_5(%arg0: i32, %arg1: i32) -> (i32, i32, i32) {
    %c0_i32 = arith.constant 0 : i32
    %c0_i32_0 = arith.constant 0 : i32
    %c0_i32_1 = arith.constant 0 : i32
    return %arg0, %c0_i32, %c0_i32_0 : i32, i32, i32
  }
}

module attributes {stable_mosaic.version = 11 : i64} {
  func.func @kernel(%arg0: i32, %arg1: i32, %arg2: i32, %arg3: memref<2x3xi32, #tpu.memory_space<smem>>, %arg4: memref<2xf32, #tpu.memory_space<smem>>, %arg5: memref<1x2x32xf32, #tpu.memory_space<vmem>>, %arg6: memref<1x32xf32, #tpu.memory_space<vmem>>, %arg7: memref<1x2x32xf32, #tpu.memory_space<vmem>>, %arg8: memref<1x1x1x128xf32, #tpu.memory_space<vmem>>, %arg9: memref<2x32xf32, #tpu.memory_space<vmem>>) attributes {dimension_semantics = [#tpu.dimension_semantics<parallel>, #tpu.dimension_semantics<parallel>, #tpu.dimension_semantics<arbitrary>], iteration_bounds = array<i64: 2, 1, 3>, scalar_prefetch = 1 : i64, scratch_operands = 1 : i64, tpu.core_type = #tpu.core_type<tc>, window_params = [{transform_indices = @transform_0, window_bounds = array<i64: 2>}, {transform_indices = @transform_1, window_bounds = array<i64: 1, 2, 32>}, {pipeline_mode = #tpu.pipeline_mode<synchronous>, transform_indices = @transform_2, window_bounds = array<i64: 1, 32>}, {transform_indices = @transform_3, window_bounds = array<i64: 1, 2, 32>}, {transform_indices = @transform_4, window_bounds = array<i64: 1, 1, 1, 128>}]} {
    %c0_i32 = arith.constant 0 : i32
    %0 = arith.cmpi eq, %arg2, %c0_i32 : i32
    %1 = arith.extui %0 : i1 to i32
    %c0_i32_0 = arith.constant 0 : i32
    %2 = arith.cmpi ne, %1, %c0_i32_0 : i32
    scf.if %2 {
      %c0_16 = arith.constant 0 : index
      %c0_17 = arith.constant 0 : index
      %c0_18 = arith.constant 0 : index
      %30 = vector.load %arg5[%c0_16, %c0_17, %c0_18] : memref<1x2x32xf32, #tpu.memory_space<vmem>>, vector<1x2x32xf32>
      %31 = vector.shape_cast %30 : vector<1x2x32xf32> to vector<2x32xf32>
      %c0_19 = arith.constant 0 : index
      %c0_20 = arith.constant 0 : index
      %32 = vector.load %arg6[%c0_19, %c0_20] : memref<1x32xf32, #tpu.memory_space<vmem>>, vector<1x32xf32>
      %c0_21 = arith.constant 0 : index
      %33 = memref.load %arg4[%c0_21] : memref<2xf32, #tpu.memory_space<smem>>
      %34 = vector.broadcast %32 : vector<1x32xf32> to vector<2x32xf32>
      %35 = arith.subf %31, %34 : vector<2x32xf32>
      %36 = vector.broadcast %33 : f32 to vector<2x32xf32>
      %37 = arith.mulf %35, %36 : vector<2x32xf32>
      %cst_22 = arith.constant dense<0xFF800000> : vector<2xf32>
      %38 = vector.multi_reduction <maximumf>, %37, %cst_22 [1] : vector<2x32xf32> to vector<2xf32>
      %39 = vector.shape_cast %38 : vector<2xf32> to vector<2x1xf32>
      %40 = vector.broadcast %39 : vector<2x1xf32> to vector<2x32xf32>
      %41 = arith.subf %37, %40 : vector<2x32xf32>
      %42 = math.exp %41 : vector<2x32xf32>
      %cst_23 = arith.constant dense<0.000000e+00> : vector<2xf32>
      %43 = vector.multi_reduction <add>, %42, %cst_23 [1] : vector<2x32xf32> to vector<2xf32>
      %44 = vector.shape_cast %43 : vector<2xf32> to vector<2x1xf32>
      %45 = tpu.reciprocal %44 : vector<2x1xf32> -> vector<2x1xf32>
      %46 = vector.broadcast %45 : vector<2x1xf32> to vector<2x32xf32>
      %47 = arith.mulf %42, %46 : vector<2x32xf32>
      %c0_24 = arith.constant 0 : index
      %c0_25 = arith.constant 0 : index
      %48 = vector.load %arg9[%c0_24, %c0_25] : memref<2x32xf32, #tpu.memory_space<vmem>>, vector<2x32xf32>
      tpu.vector_store %arg9[%c0_24, %c0_25], %47 {strides = array<i32>} : memref<2x32xf32, #tpu.memory_space<vmem>>, vector<2x32xf32>,
      %cst_26 = arith.constant 0.000000e+00 : f32
      %49 = vector.broadcast %cst_26 : f32 to vector<1x1x1x128xf32>
      %c0_27 = arith.constant 0 : index
      %c0_28 = arith.constant 0 : index
      %c0_29 = arith.constant 0 : index
      %c0_30 = arith.constant 0 : index
      %50 = vector.load %arg8[%c0_27, %c0_28, %c0_29, %c0_30] : memref<1x1x1x128xf32, #tpu.memory_space<vmem>>, vector<1x1x1x128xf32>
      tpu.vector_store %arg8[%c0_27, %c0_28, %c0_29, %c0_30], %49 {strides = array<i32>} : memref<1x1x1x128xf32, #tpu.memory_space<vmem>>, vector<1x1x1x128xf32>,
    } else {
    }
    %c0 = arith.constant 0 : index
    %c0_1 = arith.constant 0 : index
    %3 = vector.load %arg9[%c0, %c0_1] : memref<2x32xf32, #tpu.memory_space<vmem>>, vector<2x32xf32>
    %c0_2 = arith.constant 0 : index
    %c0_3 = arith.constant 0 : index
    %c0_4 = arith.constant 0 : index
    %4 = vector.load %arg7[%c0_2, %c0_3, %c0_4] : memref<1x2x32xf32, #tpu.memory_space<vmem>>, vector<1x2x32xf32>
    %5 = vector.shape_cast %4 : vector<1x2x32xf32> to vector<2x32xf32>
    %c1 = arith.constant 1 : index
    %6 = memref.load %arg4[%c1] : memref<2xf32, #tpu.memory_space<smem>>
    %7 = vector.broadcast %6 : f32 to vector<2x32xf32>
    %8 = arith.mulf %5, %7 : vector<2x32xf32>
    %cst = arith.constant dense<0xFF800000> : vector<2xf32>
    %9 = vector.multi_reduction <maximumf>, %8, %cst [1] : vector<2x32xf32> to vector<2xf32>
    %10 = vector.shape_cast %9 : vector<2xf32> to vector<2x1xf32>
    %11 = vector.broadcast %10 : vector<2x1xf32> to vector<2x32xf32>
    %12 = arith.subf %8, %11 : vector<2x32xf32>
    %13 = math.exp %12 : vector<2x32xf32>
    %cst_5 = arith.constant dense<0.000000e+00> : vector<2xf32>
    %14 = vector.multi_reduction <add>, %13, %cst_5 [1] : vector<2x32xf32> to vector<2xf32>
    %15 = vector.shape_cast %14 : vector<2xf32> to vector<2x1xf32>
    %16 = math.log %15 : vector<2x1xf32>
    %17 = vector.broadcast %16 : vector<2x1xf32> to vector<2x32xf32>
    %18 = arith.subf %17, %12 : vector<2x32xf32>
    %19 = arith.mulf %3, %18 : vector<2x32xf32>
    %cst_6 = arith.constant dense<0.000000e+00> : vector<2xf32>
    %20 = vector.multi_reduction <add>, %19, %cst_6 [1] : vector<2x32xf32> to vector<2xf32>
    %21 = vector.shape_cast %20 : vector<2xf32> to vector<2x1xf32>
    %c0_7 = arith.constant 0 : index
    %c0_8 = arith.constant 0 : index
    %c0_9 = arith.constant 0 : index
    %c0_10 = arith.constant 0 : index
    %22 = vector.load %arg8[%c0_7, %c0_8, %c0_9, %c0_10] : memref<1x1x1x128xf32, #tpu.memory_space<vmem>>, vector<1x1x1x128xf32>
    %23 = vector.shape_cast %21 : vector<2x1xf32> to vector<1x2x1xf32>
    %cst_11 = arith.constant dense<0.000000e+00> : vector<1xf32>
    %24 = vector.multi_reduction <add>, %23, %cst_11 [1, 2] : vector<1x2x1xf32> to vector<1xf32>
    %25 = vector.shape_cast %24 : vector<1xf32> to vector<1x1x1xf32>
    %26 = vector.extract %25[0, 0, 0] : f32 from vector<1x1x1xf32>
    %27 = vector.broadcast %26 : f32 to vector<1x1x1x128xf32>
    %28 = arith.addf %22, %27 : vector<1x1x1x128xf32>
    %c0_12 = arith.constant 0 : index
    %c0_13 = arith.constant 0 : index
    %c0_14 = arith.constant 0 : index
    %c0_15 = arith.constant 0 : index
    %29 = vector.load %arg8[%c0_12, %c0_13, %c0_14, %c0_15] : memref<1x1x1x128xf32, #tpu.memory_space<vmem>>, vector<1x1x1x128xf32>
    tpu.vector_store %arg8[%c0_12, %c0_13, %c0_14, %c0_15], %28 {strides = array<i32>} : memref<1x1x1x128xf32, #tpu.memory_space<vmem>>, vector<1x1x1x128xf32>,
    return
  }
  func.func @transform_0(%arg0: i32, %arg1: i32, %arg2: i32, %arg3: memref<2x3xi32, #tpu.memory_space<smem>>) -> i32 {
    %c0_i32 = arith.constant 0 : i32
    %c0_i32_0 = arith.constant 0 : i32
    return %c0_i32 : i32
  }
  func.func @transform_1(%arg0: i32, %arg1: i32, %arg2: i32, %arg3: memref<2x3xi32, #tpu.memory_space<smem>>) -> (i32, i32, i32) {
    %c0_i32 = arith.constant 0 : i32
    %c0_i32_0 = arith.constant 0 : i32
    return %arg0, %arg1, %c0_i32 : i32, i32, i32
  }
  func.func @transform_2(%arg0: i32, %arg1: i32, %arg2: i32, %arg3: memref<2x3xi32, #tpu.memory_space<smem>>) -> (i32, i32) {
    %c0_i32 = arith.constant 0 : i32
    %c0_i32_0 = arith.constant 0 : i32
    %c0_i32_1 = arith.constant 0 : i32
    return %c0_i32, %c0_i32_0 : i32, i32
  }
  func.func @transform_3(%arg0: i32, %arg1: i32, %arg2: i32, %arg3: memref<2x3xi32, #tpu.memory_space<smem>>) -> (i32, i32, i32) {
    %0 = arith.index_cast %arg0 : i32 to index
    %1 = arith.index_cast %arg2 : i32 to index
    %2 = memref.load %arg3[%0, %1] : memref<2x3xi32, #tpu.memory_space<smem>>
    %c0_i32 = arith.constant 0 : i32
    %c0_i32_0 = arith.constant 0 : i32
    return %2, %arg1, %c0_i32 : i32, i32, i32
  }
  func.func @transform_4(%arg0: i32, %arg1: i32, %arg2: i32, %arg3: memref<2x3xi32, #tpu.memory_space<smem>>) -> (i32, i32, i32, i32) {
    %c0_i32 = arith.constant 0 : i32
    %c0_i32_0 = arith.constant 0 : i32
    %c0_i32_1 = arith.constant 0 : i32
    return %arg0, %arg1, %c0_i32, %c0_i32_0 : i32, i32, i32, i32
  }
}

</mosaic_0001>

<llo_original>
// kernel: squeeze.3
$region0: #{squeeze.3}
  %s0 = inlined_call_operand.vmem [shape: f32[32], index: 0, kind: input, shape index: {}]
  %s1 = inlined_call_operand.vmem [shape: f32[2,2,8], index: 1, kind: output, shape index: {}]
  $region1: #{squeeze.3} parent=0
    #allocation0 [shape = 'u8[8192]{0}', space=vmem, size = 0x2000, scoped, tag = 'scoped mem for output reshape']
    #allocation1 [shape = 'u8[4096]{0}', space=vmem, size = 0x1000, scoped, tag = 'scoped mem for input reshape']
    %s3 = sshllo.u32 0, 1
    %v4 = vld [vmem:[%s0] sm:%s3]
    %5 = vst [vmem:[#allocation1] sm:%s3] %v4
    %v6 = vld [vmem:[#allocation1] sm:$0x1]
    %vm7 = vcmask 64512
    %8 = vst.msk [vmem:[#allocation0] sm:$0x1] %vm7, %v6
    %v9 = vld [vmem:[#allocation1] sm:$0x1]
    %10 = vrot.lane.b32.xlu0 %v9, 120
    %v11 = vpop.permute.xlu0 %10
    %vm12 = vcmask 64512
    %s13 = scalar_lea.vmem [#allocation0], 1
    %14 = vst.msk [vmem:[%s13] sm:$0x1] %vm12, %v11
    %v15 = vld [vmem:[#allocation1] sm:$0x1]
    %16 = vrot.lane.b32.xlu0 %v15, 112
    %v17 = vpop.permute.xlu0 %16
    %vm18 = vcmask 64512
    %s19 = scalar_lea.vmem [#allocation0], 8
    %20 = vst.msk [vmem:[%s19] sm:$0x1] %vm18, %v17
    %v21 = vld [vmem:[#allocation1] sm:$0x1]
    %22 = vrot.lane.b32.xlu0 %v21, 104
    %v23 = vpop.permute.xlu0 %22
    %vm24 = vcmask 64512
    %s25 = scalar_lea.vmem [#allocation0], 9
    %26 = vst.msk [vmem:[%s25] sm:$0x1] %vm24, %v23
    %s28 = sshllo.u32 0, 2
    %v30 = vld [vmem:[#allocation0] sm:%s28]
    %s31 = sshllo.u32 0, 2
    %32 = vst [vmem:[%s1] sm:%s31] %v30
    %s33 = scalar_lea.vmem [#allocation0], 8
    %v34 = vld [vmem:[%s33] sm:%s28]
    %s35 = sshllo.u32 0, 2
    %s36 = scalar_lea.vmem %s1, 2
    %37 = vst [vmem:[%s36] sm:%s35] %v34

// kernel: _forward_impl.2
$region0: #{_forward_impl.2}
  #allocation0 [shape = 'u32[]', space=smem, size = 0x4, offset = 0x4, fixed_abs, tag = 'smem constant byte address 0x4 - core index']
  #allocation1 [shape = 'u32[144,128]{1,0:T(1,128)}', space=vmem, size = 0x12000, scoped, tag = 'internal scratch']
  #allocation2 [shape = 'f32[2,32]{1,0:T(2,128)}', space=vmem, size = 0x400, scoped, tag = 'scratch operand']
  #allocation3 [shape = 's32[1]{0}', space=sflag, size = 0x4, scoped, tag = 'scoped memory for _forward_impl.2']
  #allocation4 [shape = 'u8[1024]{0}', space=smem, size = 0x400, scoped, tag = 'prefetched SMEM operand 0']
  %s0 = inlined_call_operand.vmem [shape: s32[2,3], index: 0, kind: input, shape index: {}]
  %s1 = inlined_call_operand.vmem [shape: f32[2], index: 1, kind: input, shape index: {}]
  %s2 = inlined_call_operand.vmem [shape: f32[2,2,32], index: 2, kind: input, shape index: {}]
  %s3 = inlined_call_operand.vmem [shape: f32[1,32], index: 3, kind: input, shape index: {}]
  %s4 = inlined_call_operand.vmem [shape: f32[4,2,32], index: 4, kind: input, shape index: {}]
  %s5 = inlined_call_operand.vmem [shape: f32[2,1,1,128], index: 5, kind: output, shape index: {}]
  %s6 = sld [smem:[#allocation0]]
  $region57: #{_forward_impl.2} parent=0
    _
  %s8 = ssub.s32 1, %s6
  %s9 = scalar_select 0, %s8, %s6
  %s10 = sshll.u32 %s0, 4
  %s11 = int_to_ptr.vmem [resolvable:$true] %s10
  %13 = dma.vmem_to_smem %s11, 32, [#allocation4], [#allocation3]
  %14 = dma.done [#allocation3], 32
  %15 = sfence
  $region1: #{_forward_impl.2} parent=0
    #allocation5 [shape = 'u8[512]{0}', space=smem, size = 0x200, scoped, tag = 'input window, operand 1, single buffered']
    #allocation6 [shape = 's32[2]{0}', space=sflag, size = 0x8, scoped, tag = 'scoped memory for _forward_impl.2']
    %16 = vsyncpa [#allocation6], 0
    loop: start=0, step=1, limit=8
    $region2: #{_forward_impl.2} parent=1 // loop_pre_header
      _
    $region3: #{_forward_impl.2} parent=1 // loop_header
      %s18 = sphi 0, %s22
      %p19 = scmp.ge.s32.totalorder %s18, 8
      %s25 = sphi 0, %s44
      %s26 = sphi 0, %s40
      %s27 = sphi 0, %s36
      %s28 = sphi 0, %s25
      %s29 = sphi 0, %s26
      %s30 = sphi 0, %s27
      %s31 = sphi 0, %s28
      %s32 = sphi 0, %s29
      %s33 = sphi 0, %s30
      %s45 = sphi 0, %s45
      %s47 = sphi 0, %s45
      %s48 = sphi 0, %s47
      %s62 = sphi 0, %s48
      %s70 = sphi 0, %s72
      %s73 = sphi 0, %s70
      %s74 = sphi 0, %s73
      %s90 = sphi 0, %s74
      %s94 = sphi 0, %s94
      %s96 = sphi 0, %s94
      %s97 = sphi 0, %s96
      %s111 = sphi 0, %s97
      %s135 = sphi 0, %s137
      %s138 = sphi 0, %s135
      %s139 = sphi 0, %s138
      %s155 = sphi 0, %s139
      %s163 = sphi 0, %s165
      %s166 = sphi 0, %s163
      %s167 = sphi 0, %s166
      %s183 = sphi 0, %s167
    $region4: #{_forward_impl.2} parent=1 // loop_header_branch
      %21 = sbr.rel (%p19) target = $region8
    $region5: #{_forward_impl.2} parent=1 // loop_body
      %s23 = ssub.s32 %s18, 1
      %s24 = ssub.s32 %s18, 2
      %s34 = sadd.s32 1, %s27
      %p35 = scmp.ge.s32.totalorder %s34, 3
      %s36 = scalar_select %p35, 0, %s34
      %s37 = sadd.s32 1, %s26
      %s38 = scalar_select %p35, %s37, %s26
      %p39 = scmp.ge.s32.totalorder %s38, 1
      %s40 = scalar_select %p39, 0, %s38
      %s41 = sadd.s32 1, %s25
      %s42 = scalar_select %p39, %s41, %s25
      %p43 = scmp.ge.s32.totalorder %s42, 2
      %s44 = scalar_select %p43, 0, %s42
      %s46 = sadd.s32 %s45, 1
      %p49 = scmp.eq.s32.totalorder %s18, 5
      %p50 = scmp.ne.s32.totalorder %s45, %s47
      %p51 = scmp.eq.s32.totalorder %s18, 0
      %p52 = por %p50, %p51
      %p53 = scmp.ne.s32.totalorder %s45, %s47
      %p54 = scmp.eq.s32.totalorder %s23, 5
      %p55 = por %p53, %p54
      %p56 = scmp.ne.s32.totalorder %s47, %s48
      %p57 = scmp.eq.s32.totalorder %s23, 0
      %p58 = por %p56, %p57
      %p59 = scmp.ne.s32.totalorder %s47, %s48
      %p60 = scmp.eq.s32.totalorder %s24, 5
      %p61 = por %p59, %p60
      %p63 = scmp.ne.s32.totalorder %s48, %s62
      %p64 = scmp.eq.s32.totalorder %s24, 0
      %p65 = por %p63, %p64
      %s66 = ssub.s32 %s25, %s44
      %s67 = ssub.s32 %s26, %s40
      %s68 = sor.u32 %s66, %s67
      %p69 = scmp.eq.s32.totalorder %s68, 0
      %s71 = sadd.s32 %s70, 1
      %s72 = scalar_select %p69, %s70, %s71
      %p75 = pneg %p69
      %p76 = scmp.eq.s32.totalorder %s18, 5
      %p77 = por %p75, %p76
      %p78 = scmp.ne.s32.totalorder %s70, %s73
      %p79 = scmp.eq.s32.totalorder %s18, 0
      %p80 = por %p78, %p79
      %p81 = scmp.ne.s32.totalorder %s70, %s73
      %p82 = scmp.eq.s32.totalorder %s23, 5
      %p83 = por %p81, %p82
      %p84 = scmp.ne.s32.totalorder %s73, %s74
      %p85 = scmp.eq.s32.totalorder %s23, 0
      %p86 = por %p84, %p85
      %p87 = scmp.ne.s32.totalorder %s73, %s74
      %p88 = scmp.eq.s32.totalorder %s24, 5
      %p89 = por %p87, %p88
      %p91 = scmp.ne.s32.totalorder %s74, %s90
      %p92 = scmp.eq.s32.totalorder %s24, 0
      %p93 = por %p91, %p92
      %s95 = sadd.s32 %s94, 1
      %p98 = scmp.eq.s32.totalorder %s18, 5
      %p99 = scmp.ne.s32.totalorder %s94, %s96
      %p100 = scmp.eq.s32.totalorder %s18, 0
      %p101 = por %p99, %p100
      %p102 = scmp.ne.s32.totalorder %s94, %s96
      %p103 = scmp.eq.s32.totalorder %s23, 5
      %p104 = por %p102, %p103
      %p105 = scmp.ne.s32.totalorder %s96, %s97
      %p106 = scmp.eq.s32.totalorder %s23, 0
      %p107 = por %p105, %p106
      %p108 = scmp.ne.s32.totalorder %s96, %s97
      %p109 = scmp.eq.s32.totalorder %s24, 5
      %p110 = por %p108, %p109
      %p112 = scmp.ne.s32.totalorder %s97, %s111
      %p113 = scmp.eq.s32.totalorder %s24, 0
      %p114 = por %p112, %p113
      %s115 = sshra.s32 %s27, 7
      %s116 = sand.u32 %s27, 127
      %s117 = sadd.s32 %s115, %s25
      %s118 = smul.u32 %s117, 128
      %s119 = sshra.s32 %s27, 7
      %s120 = sand.u32 %s27, 127
      %s121 = sadd.s32 %s118, %s120
      %s122 = sld [smem:[#allocation4 + %s121]]
      %s123 = sshra.s32 %s36, 7
      %s124 = sand.u32 %s36, 127
      %s125 = sadd.s32 %s123, %s44
      %s126 = smul.u32 %s125, 128
      %s127 = sshra.s32 %s36, 7
      %s128 = sand.u32 %s36, 127
      %s129 = sadd.s32 %s126, %s128
      %s130 = sld [smem:[#allocation4 + %s129]]
      %s131 = ssub.s32 %s122, %s130
      %s132 = ssub.s32 %s26, %s40
      %s133 = sor.u32 %s131, %s132
      %p134 = scmp.eq.s32.totalorder %s133, 0
      %s136 = sadd.s32 %s135, 1
      %s137 = scalar_select %p134, %s135, %s136
      %p140 = pneg %p134
      %p141 = scmp.eq.s32.totalorder %s18, 5
      %p142 = por %p140, %p141
      %p143 = scmp.ne.s32.totalorder %s135, %s138
      %p144 = scmp.eq.s32.totalorder %s18, 0
      %p145 = por %p143, %p144
      %p146 = scmp.ne.s32.totalorder %s135, %s138
      %p147 = scmp.eq.s32.totalorder %s23, 5
      %p148 = por %p146, %p147
      %p149 = scmp.ne.s32.totalorder %s138, %s139
      %p150 = scmp.eq.s32.totalorder %s23, 0
      %p151 = por %p149, %p150
      %p152 = scmp.ne.s32.totalorder %s138, %s139
      %p153 = scmp.eq.s32.totalorder %s24, 5
      %p154 = por %p152, %p153
      %p156 = scmp.ne.s32.totalorder %s139, %s155
      %p157 = scmp.eq.s32.totalorder %s24, 0
      %p158 = por %p156, %p157
      %s159 = ssub.s32 %s25, %s44
      %s160 = ssub.s32 %s26, %s40
      %s161 = sor.u32 %s159, %s160
      %p162 = scmp.eq.s32.totalorder %s161, 0
      %s164 = sadd.s32 %s163, 1
      %s165 = scalar_select %p162, %s163, %s164
      %p168 = pneg %p162
      %p169 = scmp.eq.s32.totalorder %s18, 5
      %p170 = por %p168, %p169
      %p171 = scmp.ne.s32.totalorder %s163, %s166
      %p172 = scmp.eq.s32.totalorder %s18, 0
      %p173 = por %p171, %p172
      %p174 = scmp.ne.s32.totalorder %s163, %s166
      %p175 = scmp.eq.s32.totalorder %s23, 5
      %p176 = por %p174, %p175
      %p177 = scmp.ne.s32.totalorder %s166, %s167
      %p178 = scmp.eq.s32.totalorder %s23, 0
      %p179 = por %p177, %p178
      %p180 = scmp.ne.s32.totalorder %s166, %s167
      %p181 = scmp.eq.s32.totalorder %s24, 5
      %p182 = por %p180, %p181
      %p184 = scmp.ne.s32.totalorder %s167, %s183
      %p185 = scmp.eq.s32.totalorder %s24, 0
      %p186 = por %p184, %p185
      %p187 = scmp.le.s32.totalorder 1, %s18
      %p188 = scmp.lt.s32.totalorder %s18, 7
      %p189 = pnand %p187, %p188
      %p190 = pneg %p189
      // Predicated region
      $region9: #{_forward_impl.2} parent=5 // pred_check
        _
      $region10: #{_forward_impl.2} parent=5 // pred_check_branch
        %192 = sbr.rel (%p189) target = $region12
      $region11: #{_forward_impl.2} parent=5 // pred_region
        %s193 = ssub.s32 %s18, 1
        // Predicated region
        $region13: #{_forward_impl.2} parent=11 // pred_check
          %p194 = pneg %p58
        $region14: #{_forward_impl.2} parent=11 // pred_check_branch
          %196 = sbr.rel (%p194) target = $region16
        $region15: #{_forward_impl.2} parent=11 // pred_region
          %s198 = ssub.s32 16, 16
          %199 = vsyncadd [#allocation6], %s198
          %s201 = sshll.u32 %s1, 4
          %s202 = int_to_ptr.vmem [resolvable:$true] %s201
          %204 = dma.vmem_to_smem %s202, 16, [#allocation5], [#allocation6]
        $region16: #{_forward_impl.2} parent=11 // pred_fallthru
          _
        // Predicated region
        $region17: #{_forward_impl.2} parent=11 // pred_check
          %p205 = pneg %p107
        $region18: #{_forward_impl.2} parent=11 // pred_check_branch
          %207 = sbr.rel (%p205) target = $region20
        $region19: #{_forward_impl.2} parent=11 // pred_region
          _
        $region20: #{_forward_impl.2} parent=11 // pred_fallthru
          _
      $region12: #{_forward_impl.2} parent=5 // pred_fallthru
        _
      %p208 = scmp.lt.s32.totalorder %s18, 6
      // Predicated region
      $region21: #{_forward_impl.2} parent=5 // pred_check
        %p209 = pneg %p208
      $region22: #{_forward_impl.2} parent=5 // pred_check_branch
        %211 = sbr.rel (%p209) target = $region24
      $region23: #{_forward_impl.2} parent=5 // pred_region
        // Predicated region
        $region25: #{_forward_impl.2} parent=23 // pred_check
          %p212 = pneg %p80
        $region26: #{_forward_impl.2} parent=23 // pred_check_branch
          %214 = sbr.rel (%p212) target = $region28
        $region27: #{_forward_impl.2} parent=23 // pred_region
          %p215 = scmp.lt.s32.totalorder %s25, 1
          %s216 = scalar_select %p215, %s25, 1
          %p217 = scmp.lt.s32.totalorder %s26, 0
          %s218 = scalar_select %p217, %s26, 0
          %s219 = sadd.s32 %s218, %s216
          %s220 = smul.addr %s219, 2
          %s221 = scalar_lea.vmem %s2, %s220
        $region28: #{_forward_impl.2} parent=23 // pred_fallthru
          _
        // Predicated region
        $region29: #{_forward_impl.2} parent=23 // pred_check
          %p222 = pneg %p145
        $region30: #{_forward_impl.2} parent=23 // pred_check_branch
          %224 = sbr.rel (%p222) target = $region32
        $region31: #{_forward_impl.2} parent=23 // pred_region
          %s225 = sshra.s32 %s27, 7
          %s226 = sand.u32 %s27, 127
          %s227 = sadd.s32 %s225, %s25
          %s228 = smul.u32 %s227, 128
          %s229 = sshra.s32 %s27, 7
          %s230 = sand.u32 %s27, 127
          %s231 = sadd.s32 %s228, %s230
          %s232 = sld [smem:[#allocation4 + %s231]]
          %p233 = scmp.lt.s32.totalorder %s232, 3
          %s234 = scalar_select %p233, %s232, 3
          %p235 = scmp.lt.s32.totalorder %s26, 0
          %s236 = scalar_select %p235, %s26, 0
          %s237 = sadd.s32 %s236, %s234
          %s238 = smul.addr %s237, 2
          %s239 = scalar_lea.vmem %s4, %s238
          %s240 = sshra.s32 %s27, 7
          %s241 = sand.u32 %s27, 127
          %s242 = sadd.s32 %s240, %s25
          %s243 = smul.u32 %s242, 128
          %s244 = sshra.s32 %s27, 7
          %s245 = sand.u32 %s27, 127
          %s246 = sadd.s32 %s243, %s245
          %s247 = sld [smem:[#allocation4 + %s246]]
        $region32: #{_forward_impl.2} parent=23 // pred_fallthru
          _
      $region24: #{_forward_impl.2} parent=5 // pred_fallthru
        _
      %p248 = scmp.le.s32.totalorder 1, %s18
      %p249 = scmp.lt.s32.totalorder %s18, 7
      %p250 = pnand %p248, %p249
      %p251 = pneg %p250
      // Predicated region
      $region33: #{_forward_impl.2} parent=5 // pred_check
        _
      $region34: #{_forward_impl.2} parent=5 // pred_check_branch
        %253 = sbr.rel (%p250) target = $region36
      $region35: #{_forward_impl.2} parent=5 // pred_region
        %s254 = ssub.s32 %s18, 1
        // Predicated region
        $region37: #{_forward_impl.2} parent=35 // pred_check
          %p255 = pneg %p58
        $region38: #{_forward_impl.2} parent=35 // pred_check_branch
          %257 = sbr.rel (%p255) target = $region40
        $region39: #{_forward_impl.2} parent=35 // pred_region
          %258 = dma.done [#allocation6], 16
        $region40: #{_forward_impl.2} parent=35 // pred_fallthru
          _
        %259 = sfence
        %p260 = pneg %p58
        %p261 = pneg %p55
        %p262 = scmp.lt.s32.totalorder %s28, 1
        %s263 = scalar_select %p262, %s28, 1
        %p264 = scmp.lt.s32.totalorder %s29, 0
        %s265 = scalar_select %p264, %s29, 0
        %s266 = sadd.s32 %s265, %s263
        %s267 = smul.addr %s266, 2
        %s268 = scalar_lea.vmem %s2, %s267
        %p269 = pneg %p86
        %p270 = pneg %p83
        %p271 = pneg %p107
        %p272 = pneg %p104
        %s273 = sshra.s32 %s30, 7
        %s274 = sand.u32 %s30, 127
        %s275 = sadd.s32 %s273, %s28
        %s276 = smul.u32 %s275, 128
        %s277 = sshra.s32 %s30, 7
        %s278 = sand.u32 %s30, 127
        %s279 = sadd.s32 %s276, %s278
        %s280 = sld [smem:[#allocation4 + %s279]]
        %p281 = scmp.lt.s32.totalorder %s280, 3
        %s282 = scalar_select %p281, %s280, 3
        %p283 = scmp.lt.s32.totalorder %s29, 0
        %s284 = scalar_select %p283, %s29, 0
        %s285 = sadd.s32 %s284, %s282
        %s286 = smul.addr %s285, 2
        %s287 = scalar_lea.vmem %s4, %s286
        %p288 = pneg %p151
        %p289 = pneg %p148
        %p290 = pneg %p179
        %p291 = pneg %p176
        %p292 = scmp.lt.s32.totalorder %s28, 1
        %s293 = scalar_select %p292, %s28, 1
        %p294 = scmp.lt.s32.totalorder %s29, 0
        %s295 = scalar_select %p294, %s29, 0
        %s296 = sadd.s32 %s295, %s293
        %s297 = scalar_lea.vmem %s5, %s296
        %p298 = scmp.lt.s32.totalorder %s28, 1
        %s299 = scalar_select %p298, %s28, 1
        %p300 = scmp.lt.s32.totalorder %s29, 0
        %s301 = scalar_select %p300, %s29, 0
        %s302 = sadd.s32 %s301, %s299
        %s303 = smul.addr %s302, 2
        %s304 = scalar_lea.vmem %s2, %s303
        %s305 = sshra.s32 %s30, 7
        %s306 = sand.u32 %s30, 127
        %s307 = sadd.s32 %s305, %s28
        %s308 = smul.u32 %s307, 128
        %s309 = sshra.s32 %s30, 7
        %s310 = sand.u32 %s30, 127
        %s311 = sadd.s32 %s308, %s310
        %s312 = sld [smem:[#allocation4 + %s311]]
        %p313 = scmp.lt.s32.totalorder %s312, 3
        %s314 = scalar_select %p313, %s312, 3
        %p315 = scmp.lt.s32.totalorder %s29, 0
        %s316 = scalar_select %p315, %s29, 0
        %s317 = sadd.s32 %s316, %s314
        %s318 = smul.addr %s317, 2
        %s319 = scalar_lea.vmem %s4, %s318
        %s320 = sshra.s32 %s30, 7
        %s321 = sand.u32 %s30, 127
        %s322 = sadd.s32 %s320, %s28
        %s323 = smul.u32 %s322, 128
        %s324 = sshra.s32 %s30, 7
        %s325 = sand.u32 %s30, 127
        %s326 = sadd.s32 %s323, %s325
        %s327 = sld [smem:[#allocation4 + %s326]]
        %p328 = scmp.lt.s32.totalorder %s28, 1
        %s329 = scalar_select %p328, %s28, 1
        %p330 = scmp.lt.s32.totalorder %s29, 0
        %s331 = scalar_select %p330, %s29, 0
        %s332 = sadd.s32 %s331, %s329
        %s333 = scalar_lea.vmem %s5, %s332
        %p334 = scmp.eq.s32.totalorder %s30, 0
        // Predicated region
        $region41: #{_forward_impl.2} parent=35 // pred_check
          %p335 = pneg %p334
        $region42: #{_forward_impl.2} parent=35 // pred_check_branch
          %337 = sbr.rel (%p335) target = $region44
        $region43: #{_forward_impl.2} parent=35 // pred_region
          %v338 = vld [vmem:[%s304] sm:$0x3]
          %v339 = vld [vmem:[%s3] sm:$0x1]
          %s340 = sld [smem:[#allocation5]]
          %v342 = vlaneseq
          %v343 = vshrl.u32 %v342, 7
          %v344 = vsub.s32 0, %v343
          %v345 = vrot.slane %v339, %v344
          %v347 = vsub.f32 %v338, %v345
          %v348 = vstv %s340
          %v349 = vmul.f32 %v347, %v348
          %vm350 = vcmask 254976
          %v351 = vsel %vm350, %v349, -inf
          %352 = vmax.xlane.f32.xlu0 %v351
          %v353 = vpop.xlane.xlu0 %352
          %v354 = vsub.f32 %v349, %v353
          %v355 = vmul.f32 %v354, 1.442695
          %v356 = vpow.pop %v355
          %v357 = vsel %vm350, %v356, 0.0
          %358 = vadd.xlane.f32.xlu0 %v357
          %v359 = vpop.xlane.xlu0 %358
          %v360 = vrcp.pop %v359
          %v361 = vmul.f32 %v356, %v360
          %362 = vst.msk [vmem:[#allocation2] sm:$0x3] %vm350, %v361
          %363 = vst [vmem:[%s333] sm:$0x1] 0.0
        $region44: #{_forward_impl.2} parent=35 // pred_fallthru
          _
        %v364 = vld [vmem:[#allocation2] sm:$0x3]
        %v365 = vld [vmem:[%s319] sm:$0x3]
        %s366 = sld [smem:[#allocation5 + $0x1]]
        %v367 = vstv %s366
        %v368 = vmul.f32 %v365, %v367
        %vm369 = vcmask 254976
        %v370 = vsel %vm369, %v368, -inf
        %371 = vmax.xlane.f32.xlu0 %v370
        %v372 = vpop.xlane.xlu0 %371
        %v373 = vsub.f32 %v368, %v372
        %v374 = vmul.f32 %v373, 1.442695
        %v375 = vpow.pop %v374
        %v376 = vsel %vm369, %v375, 0.0
        %377 = vadd.xlane.f32.xlu0 %v376
        %v378 = vpop.xlane.xlu0 %377
        %v379 = vlog2.pop %v378
        %v380 = vmul.f32 %v379, 0.6931472
        %v381 = vsub.f32 %v380, %v373
        %v382 = vmul.f32 %v364, %v381
        %v383 = vsel %vm369, %v382, 0.0
        %384 = vadd.xlane.f32.xlu0 %v383
        %v385 = vpop.xlane.xlu0 %384
        %v386 = vld [vmem:[%s333] sm:$0x1]
        %vm387 = vcmask 1024
        %v388 = vsel %vm387, %v385, 0.0
        %389 = vadd.xlane.f32.xlu0 %v388
        %v390 = vpop.xlane.xlu0 %389
        %v391 = vrot.slane %v390, 4
        %v392 = vadd.f32 %v390, %v391
        %v393 = vrot.slane %v392, 2
        %v394 = vadd.f32 %v392, %v393
        %v395 = vrot.slane %v394, 1
        %v396 = vadd.f32 %v394, %v395
        %s397 = vtos %v396
        %v398 = vstv %s397
        %v399 = vadd.f32 %v386, %v398
        %400 = vst [vmem:[%s333] sm:$0x1] %v399
        %p401 = scmp.lt.s32.totalorder %s28, 1
        %s402 = scalar_select %p401, %s28, 1
        %p403 = scmp.lt.s32.totalorder %s29, 0
        %s404 = scalar_select %p403, %s29, 0
        %s405 = sadd.s32 %s404, %s402
        %s406 = scalar_lea.vmem %s5, %s405
        // Predicated region
        $region45: #{_forward_impl.2} parent=35 // pred_check
          %p407 = pneg %p176
        $region46: #{_forward_impl.2} parent=35 // pred_check_branch
          %409 = sbr.rel (%p407) target = $region48
        $region47: #{_forward_impl.2} parent=35 // pred_region
          _
        $region48: #{_forward_impl.2} parent=35 // pred_fallthru
          _
      $region36: #{_forward_impl.2} parent=5 // pred_fallthru
        _
      %p410 = scmp.le.s32.totalorder 2, %s18
      // Predicated region
      $region49: #{_forward_impl.2} parent=5 // pred_check
        %p411 = pneg %p410
      $region50: #{_forward_impl.2} parent=5 // pred_check_branch
        %413 = sbr.rel (%p411) target = $region52
      $region51: #{_forward_impl.2} parent=5 // pred_region
        %s414 = ssub.s32 %s18, 2
        // Predicated region
        $region53: #{_forward_impl.2} parent=51 // pred_check
          %p415 = pneg %p182
        $region54: #{_forward_impl.2} parent=51 // pred_check_branch
          %417 = sbr.rel (%p415) target = $region56
        $region55: #{_forward_impl.2} parent=51 // pred_region
          %p418 = scmp.lt.s32.totalorder %s31, 1
          %s419 = scalar_select %p418, %s31, 1
          %p420 = scmp.lt.s32.totalorder %s32, 0
          %s421 = scalar_select %p420, %s32, 0
          %s422 = sadd.s32 %s421, %s419
          %s423 = scalar_lea.vmem %s5, %s422
        $region56: #{_forward_impl.2} parent=51 // pred_fallthru
          _
      $region52: #{_forward_impl.2} parent=5 // pred_fallthru
        _
    $region6: #{_forward_impl.2} parent=1 // loop_footer
      %s22 = sadd.s32 1, %s18
    $region7: #{_forward_impl.2} parent=1 // loop_footer_branch
      %17 = sbr.rel target = $region3
    $region8: #{_forward_impl.2} parent=1 // loop_exit
      _
    %424 = vsyncpa [#allocation6], 1
    %s425 = scalar_lea.sflag [#allocation6], 1
    %426 = vsyncpa %s425, 1

// kernel: _forward_impl.3
$region0: #{_forward_impl.3}
  #allocation0 [shape = 'u32[]', space=smem, size = 0x4, offset = 0x4, fixed_abs, tag = 'smem constant byte address 0x4 - core index']
  #allocation1 [shape = 'u32[144,128]{1,0:T(1,128)}', space=vmem, size = 0x12000, scoped, tag = 'internal scratch']
  %s0 = inlined_call_operand.vmem [shape: f32[2], index: 0, kind: input, shape index: {}]
  %s1 = inlined_call_operand.vmem [shape: f32[32,32], index: 1, kind: input, shape index: {}]
  %s2 = inlined_call_operand.vmem [shape: f32[1,32], index: 2, kind: input, shape index: {}]
  %s3 = inlined_call_operand.hbm [shape: f32[32,32], index: 3, kind: input, shape index: {}]
  %s4 = inlined_call_operand.vmem [shape: f32[32,1], index: 4, kind: output, shape index: {0}]
  %s5 = inlined_call_operand.vmem [shape: f32[2,1,32], index: 5, kind: output, shape index: {1}]
  %6 = xla_tuple %s4, %s5
  %s7 = sld [smem:[#allocation0]]
  $region69: #{_forward_impl.3} parent=0
    _
  %s9 = ssub.s32 1, %s7
  %s10 = scalar_select 0, %s9, %s7
  $region1: #{_forward_impl.3} parent=0
    #allocation2 [shape = 'u8[512]{0}', space=smem, size = 0x200, scoped, tag = 'input window, operand 0, single buffered']
    #allocation3 [shape = 's32[2]{0}', space=sflag, size = 0x8, scoped, tag = 'scoped memory for _forward_impl.3']
    #allocation4 [shape = 's32[2]{0}', space=sflag, size = 0x8, scoped, tag = 'scoped memory for _forward_impl.3']
    #allocation5 [shape = 'u8[16384]{0}', space=vmem, size = 0x4000, scoped, tag = 'input window, operand 3']
    %11 = vsyncpa [#allocation4], 0
    %12 = vsyncpa [#allocation3], 0
    %s13 = scalar_lea.sflag [#allocation3], 1
    %14 = vsyncpa %s13, 0
    loop: start=0, step=1, limit=4
    $region2: #{_forward_impl.3} parent=1 // loop_pre_header
      _
    $region3: #{_forward_impl.3} parent=1 // loop_header
      %s16 = sphi 0, %s20
      %p17 = scmp.ge.s32.totalorder %s16, 4
      %s23 = sphi 0, %s35
      %s24 = sphi 0, %s31
      %s25 = sphi 0, %s23
      %s26 = sphi 0, %s24
      %s27 = sphi 0, %s25
      %s28 = sphi 0, %s26
      %s36 = sphi 0, %s36
      %s38 = sphi 0, %s36
      %s39 = sphi 0, %s38
      %s53 = sphi 0, %s39
      %s61 = sphi 0, %s63
      %s64 = sphi 0, %s61
      %s65 = sphi 0, %s64
      %s81 = sphi 0, %s65
      %s85 = sphi 0, %s85
      %s87 = sphi 0, %s85
      %s88 = sphi 0, %s87
      %s102 = sphi 0, %s88
      %s110 = sphi 0, %s112
      %s113 = sphi 0, %s110
      %s114 = sphi 0, %s113
      %s130 = sphi 0, %s114
      %s138 = sphi 0, %s140
      %s141 = sphi 0, %s138
      %s142 = sphi 0, %s141
      %s158 = sphi 0, %s142
      %s164 = sphi 0, %s166
      %s167 = sphi 0, %s164
      %s168 = sphi 0, %s167
      %s184 = sphi 0, %s168
    $region4: #{_forward_impl.3} parent=1 // loop_header_branch
      %19 = sbr.rel (%p17) target = $region8
    $region5: #{_forward_impl.3} parent=1 // loop_body
      %s21 = ssub.s32 %s16, 1
      %s22 = ssub.s32 %s16, 2
      %s29 = sadd.s32 1, %s24
      %p30 = scmp.ge.s32.totalorder %s29, 1
      %s31 = scalar_select %p30, 0, %s29
      %s32 = sadd.s32 1, %s23
      %s33 = scalar_select %p30, %s32, %s23
      %p34 = scmp.ge.s32.totalorder %s33, 2
      %s35 = scalar_select %p34, 0, %s33
      %s37 = sadd.s32 %s36, 1
      %p40 = scmp.eq.s32.totalorder %s16, 1
      %p41 = scmp.ne.s32.totalorder %s36, %s38
      %p42 = scmp.eq.s32.totalorder %s16, 0
      %p43 = por %p41, %p42
      %p44 = scmp.ne.s32.totalorder %s36, %s38
      %p45 = scmp.eq.s32.totalorder %s21, 1
      %p46 = por %p44, %p45
      %p47 = scmp.ne.s32.totalorder %s38, %s39
      %p48 = scmp.eq.s32.totalorder %s21, 0
      %p49 = por %p47, %p48
      %p50 = scmp.ne.s32.totalorder %s38, %s39
      %p51 = scmp.eq.s32.totalorder %s22, 1
      %p52 = por %p50, %p51
      %p54 = scmp.ne.s32.totalorder %s39, %s53
      %p55 = scmp.eq.s32.totalorder %s22, 0
      %p56 = por %p54, %p55
      %s57 = sadd.s32 %s23, %s24
      %s58 = sadd.s32 %s35, %s31
      %s59 = ssub.s32 %s57, %s58
      %p60 = scmp.eq.s32.totalorder %s59, 0
      %s62 = sadd.s32 %s61, 1
      %s63 = scalar_select %p60, %s61, %s62
      %p66 = pneg %p60
      %p67 = scmp.eq.s32.totalorder %s16, 1
      %p68 = por %p66, %p67
      %p69 = scmp.ne.s32.totalorder %s61, %s64
      %p70 = scmp.eq.s32.totalorder %s16, 0
      %p71 = por %p69, %p70
      %p72 = scmp.ne.s32.totalorder %s61, %s64
      %p73 = scmp.eq.s32.totalorder %s21, 1
      %p74 = por %p72, %p73
      %p75 = scmp.ne.s32.totalorder %s64, %s65
      %p76 = scmp.eq.s32.totalorder %s21, 0
      %p77 = por %p75, %p76
      %p78 = scmp.ne.s32.totalorder %s64, %s65
      %p79 = scmp.eq.s32.totalorder %s22, 1
      %p80 = por %p78, %p79
      %p82 = scmp.ne.s32.totalorder %s65, %s81
      %p83 = scmp.eq.s32.totalorder %s22, 0
      %p84 = por %p82, %p83
      %s86 = sadd.s32 %s85, 1
      %p89 = scmp.eq.s32.totalorder %s16, 1
      %p90 = scmp.ne.s32.totalorder %s85, %s87
      %p91 = scmp.eq.s32.totalorder %s16, 0
      %p92 = por %p90, %p91
      %p93 = scmp.ne.s32.totalorder %s85, %s87
      %p94 = scmp.eq.s32.totalorder %s21, 1
      %p95 = por %p93, %p94
      %p96 = scmp.ne.s32.totalorder %s87, %s88
      %p97 = scmp.eq.s32.totalorder %s21, 0
      %p98 = por %p96, %p97
      %p99 = scmp.ne.s32.totalorder %s87, %s88
      %p100 = scmp.eq.s32.totalorder %s22, 1
      %p101 = por %p99, %p100
      %p103 = scmp.ne.s32.totalorder %s88, %s102
      %p104 = scmp.eq.s32.totalorder %s22, 0
      %p105 = por %p103, %p104
      %s106 = sadd.s32 %s23, %s24
      %s107 = sadd.s32 %s35, %s31
      %s108 = ssub.s32 %s106, %s107
      %p109 = scmp.eq.s32.totalorder %s108, 0
      %s111 = sadd.s32 %s110, 1
      %s112 = scalar_select %p109, %s110, %s111
      %p115 = pneg %p109
      %p116 = scmp.eq.s32.totalorder %s16, 1
      %p117 = por %p115, %p116
      %p118 = scmp.ne.s32.totalorder %s110, %s113
      %p119 = scmp.eq.s32.totalorder %s16, 0
      %p120 = por %p118, %p119
      %p121 = scmp.ne.s32.totalorder %s110, %s113
      %p122 = scmp.eq.s32.totalorder %s21, 1
      %p123 = por %p121, %p122
      %p124 = scmp.ne.s32.totalorder %s113, %s114
      %p125 = scmp.eq.s32.totalorder %s21, 0
      %p126 = por %p124, %p125
      %p127 = scmp.ne.s32.totalorder %s113, %s114
      %p128 = scmp.eq.s32.totalorder %s22, 1
      %p129 = por %p127, %p128
      %p131 = scmp.ne.s32.totalorder %s114, %s130
      %p132 = scmp.eq.s32.totalorder %s22, 0
      %p133 = por %p131, %p132
      %s134 = sadd.s32 %s23, %s24
      %s135 = sadd.s32 %s35, %s31
      %s136 = ssub.s32 %s134, %s135
      %p137 = scmp.eq.s32.totalorder %s136, 0
      %s139 = sadd.s32 %s138, 1
      %s140 = scalar_select %p137, %s138, %s139
      %p143 = pneg %p137
      %p144 = scmp.eq.s32.totalorder %s16, 1
      %p145 = por %p143, %p144
      %p146 = scmp.ne.s32.totalorder %s138, %s141
      %p147 = scmp.eq.s32.totalorder %s16, 0
      %p148 = por %p146, %p147
      %p149 = scmp.ne.s32.totalorder %s138, %s141
      %p150 = scmp.eq.s32.totalorder %s21, 1
      %p151 = por %p149, %p150
      %p152 = scmp.ne.s32.totalorder %s141, %s142
      %p153 = scmp.eq.s32.totalorder %s21, 0
      %p154 = por %p152, %p153
      %p155 = scmp.ne.s32.totalorder %s141, %s142
      %p156 = scmp.eq.s32.totalorder %s22, 1
      %p157 = por %p155, %p156
      %p159 = scmp.ne.s32.totalorder %s142, %s158
      %p160 = scmp.eq.s32.totalorder %s22, 0
      %p161 = por %p159, %p160
      %s162 = ssub.s32 %s23, %s35
      %p163 = scmp.eq.s32.totalorder %s162, 0
      %s165 = sadd.s32 %s164, 1
      %s166 = scalar_select %p163, %s164, %s165
      %p169 = pneg %p163
      %p170 = scmp.eq.s32.totalorder %s16, 1
      %p171 = por %p169, %p170
      %p172 = scmp.ne.s32.totalorder %s164, %s167
      %p173 = scmp.eq.s32.totalorder %s16, 0
      %p174 = por %p172, %p173
      %p175 = scmp.ne.s32.totalorder %s164, %s167
      %p176 = scmp.eq.s32.totalorder %s21, 1
      %p177 = por %p175, %p176
      %p178 = scmp.ne.s32.totalorder %s167, %s168
      %p179 = scmp.eq.s32.totalorder %s21, 0
      %p180 = por %p178, %p179
      %p181 = scmp.ne.s32.totalorder %s167, %s168
      %p182 = scmp.eq.s32.totalorder %s22, 1
      %p183 = por %p181, %p182
      %p185 = scmp.ne.s32.totalorder %s168, %s184
      %p186 = scmp.eq.s32.totalorder %s22, 0
      %p187 = por %p185, %p186
      %p188 = scmp.le.s32.totalorder 1, %s16
      %p189 = scmp.lt.s32.totalorder %s16, 3
      %p190 = pnand %p188, %p189
      %p191 = pneg %p190
      // Predicated region
      $region9: #{_forward_impl.3} parent=5 // pred_check
        _
      $region10: #{_forward_impl.3} parent=5 // pred_check_branch
        %193 = sbr.rel (%p190) target = $region12
      $region11: #{_forward_impl.3} parent=5 // pred_region
        %s194 = ssub.s32 %s16, 1
        // Predicated region
        $region13: #{_forward_impl.3} parent=11 // pred_check
          %p195 = pneg %p49
        $region14: #{_forward_impl.3} parent=11 // pred_check_branch
          %197 = sbr.rel (%p195) target = $region16
        $region15: #{_forward_impl.3} parent=11 // pred_region
          %s199 = ssub.s32 16, 16
          %200 = vsyncadd [#allocation4], %s199
          %s202 = sshll.u32 %s0, 4
          %s203 = int_to_ptr.vmem [resolvable:$true] %s202
          %205 = dma.vmem_to_smem %s203, 16, [#allocation2], [#allocation4]
        $region16: #{_forward_impl.3} parent=11 // pred_fallthru
          _
        // Predicated region
        $region17: #{_forward_impl.3} parent=11 // pred_check
          %p206 = pneg %p98
        $region18: #{_forward_impl.3} parent=11 // pred_check_branch
          %208 = sbr.rel (%p206) target = $region20
        $region19: #{_forward_impl.3} parent=11 // pred_region
          _
        $region20: #{_forward_impl.3} parent=11 // pred_fallthru
          _
      $region12: #{_forward_impl.3} parent=5 // pred_fallthru
        _
      %p209 = scmp.lt.s32.totalorder %s16, 2
      // Predicated region
      $region21: #{_forward_impl.3} parent=5 // pred_check
        %p210 = pneg %p209
      $region22: #{_forward_impl.3} parent=5 // pred_check_branch
        %212 = sbr.rel (%p210) target = $region24
      $region23: #{_forward_impl.3} parent=5 // pred_region
        // Predicated region
        $region25: #{_forward_impl.3} parent=23 // pred_check
          %p213 = pneg %p71
        $region26: #{_forward_impl.3} parent=23 // pred_check_branch
          %215 = sbr.rel (%p213) target = $region28
        $region27: #{_forward_impl.3} parent=23 // pred_region
          %s216 = sadd.s32 %s23, %s24
          %s217 = smul.u32 2, %s216
          %p218 = scmp.lt.s32.totalorder %s217, 3
          %s219 = scalar_select %p218, %s217, 3
          %s220 = smul.addr %s219, 8
          %s221 = scalar_lea.vmem %s1, %s220
          %s222 = sadd.s32 %s23, %s24
          %s223 = smul.u32 2, %s222
        $region28: #{_forward_impl.3} parent=23 // pred_fallthru
          _
        // Predicated region
        $region29: #{_forward_impl.3} parent=23 // pred_check
          %p224 = pneg %p120
        $region30: #{_forward_impl.3} parent=23 // pred_check_branch
          %226 = sbr.rel (%p224) target = $region32
        $region31: #{_forward_impl.3} parent=23 // pred_region
          %s227 = sand.u32 %s110, 1
          %s228 = scalar_lea.sflag [#allocation3], %s227
          %s229 = sand.u32 %s110, 1
          %s230 = smul.addr %s229, 16
          %s231 = scalar_lea.vmem [#allocation5], %s230
          %s232 = sadd.s32 %s23, %s24
          %s233 = smul.u32 2, %s232
          %s235 = ssub.s32 256, 256
          %236 = vsyncadd %s228, %s235
          %s237 = smul.addr %s233, 128
          %s238 = scalar_lea.hbm %s3, %s237
          %s239 = sshll.u32 %s231, 4
          %s240 = int_to_ptr.vmem [resolvable:$true] %s239
          %245 = dma.hbm_to_vmem [thread:$0]  %s238, 256, %s240, %s228, 128, 128, 8
        $region32: #{_forward_impl.3} parent=23 // pred_fallthru
          _
      $region24: #{_forward_impl.3} parent=5 // pred_fallthru
        _
      %p246 = scmp.le.s32.totalorder 1, %s16
      %p247 = scmp.lt.s32.totalorder %s16, 3
      %p248 = pnand %p246, %p247
      %p249 = pneg %p248
      // Predicated region
      $region33: #{_forward_impl.3} parent=5 // pred_check
        _
      $region34: #{_forward_impl.3} parent=5 // pred_check_branch
        %251 = sbr.rel (%p248) target = $region36
      $region35: #{_forward_impl.3} parent=5 // pred_region
        %s252 = ssub.s32 %s16, 1
        // Predicated region
        $region37: #{_forward_impl.3} parent=35 // pred_check
          %p253 = pneg %p49
        $region38: #{_forward_impl.3} parent=35 // pred_check_branch
          %255 = sbr.rel (%p253) target = $region40
        $region39: #{_forward_impl.3} parent=35 // pred_region
          %256 = dma.done [#allocation4], 16
        $region40: #{_forward_impl.3} parent=35 // pred_fallthru
          _
        %s257 = sand.u32 %s113, 1
        %s258 = scalar_lea.sflag [#allocation3], %s257
        %s259 = sand.u32 %s113, 1
        %s260 = smul.addr %s259, 16
        %s261 = scalar_lea.vmem [#allocation5], %s260
        // Predicated region
        $region41: #{_forward_impl.3} parent=35 // pred_check
          %p262 = pneg %p126
        $region42: #{_forward_impl.3} parent=35 // pred_check_branch
          %264 = sbr.rel (%p262) target = $region44
        $region43: #{_forward_impl.3} parent=35 // pred_region
          %265 = dma.done %s258, 256
        $region44: #{_forward_impl.3} parent=35 // pred_fallthru
          _
        %266 = sfence
        %p267 = pneg %p49
        %p268 = pneg %p46
        %s269 = sadd.s32 %s25, %s26
        %s270 = smul.u32 2, %s269
        %p271 = scmp.lt.s32.totalorder %s270, 3
        %s272 = scalar_select %p271, %s270, 3
        %s273 = smul.addr %s272, 8
        %s274 = scalar_lea.vmem %s1, %s273
        %p275 = pneg %p77
        %p276 = pneg %p74
        %p277 = pneg %p98
        %p278 = pneg %p95
        %s279 = sand.u32 %s113, 1
        %s280 = scalar_lea.sflag [#allocation3], %s279
        %s281 = sand.u32 %s113, 1
        %s282 = smul.addr %s281, 16
        %s283 = scalar_lea.vmem [#allocation5], %s282
        %p284 = pneg %p126
        %p285 = pneg %p123
        %p286 = pneg %p154
        %p287 = pneg %p151
        %s288 = sadd.s32 %s25, %s26
        %s289 = smul.u32 2, %s288
        %p290 = scmp.lt.s32.totalorder %s289, 3
        %s291 = scalar_select %p290, %s289, 3
        %s292 = smul.addr %s291, 8
        %s293 = scalar_lea.vmem %s4, %s292
        %p294 = pneg %p180
        %p295 = pneg %p177
        %p296 = scmp.lt.s32.totalorder %s25, 1
        %s297 = scalar_select %p296, %s25, 1
        %s298 = scalar_lea.vmem %s5, %s297
        %s299 = sadd.s32 %s25, %s26
        %s300 = smul.u32 2, %s299
        %p301 = scmp.lt.s32.totalorder %s300, 3
        %s302 = scalar_select %p301, %s300, 3
        %s303 = smul.addr %s302, 8
        %s304 = scalar_lea.vmem %s1, %s303
        %s305 = sadd.s32 %s25, %s26
        %s306 = smul.u32 2, %s305
        %s307 = sadd.s32 %s25, %s26
        %s308 = smul.u32 2, %s307
        %s309 = sadd.s32 %s25, %s26
        %s310 = smul.u32 2, %s309
        %p311 = scmp.lt.s32.totalorder %s310, 3
        %s312 = scalar_select %p311, %s310, 3
        %s313 = smul.addr %s312, 8
        %s314 = scalar_lea.vmem %s4, %s313
        %s315 = sadd.s32 %s25, %s26
        %s316 = smul.u32 2, %s315
        %p317 = scmp.lt.s32.totalorder %s25, 1
        %s318 = scalar_select %p317, %s25, 1
        %s319 = scalar_lea.vmem %s5, %s318
        %v320 = vld [vmem:[%s304] sm:$0xff]
        %v321 = vld [vmem:[%s304 + $0x8] sm:$0xff]
        %p322 = scmp.eq.s32.totalorder %s26, 0
        // Predicated region
        $region45: #{_forward_impl.3} parent=35 // pred_check
          %p323 = pneg %p322
        $region46: #{_forward_impl.3} parent=35 // pred_check_branch
          %325 = sbr.rel (%p323) target = $region48
        $region47: #{_forward_impl.3} parent=35 // pred_region
          %vm326 = vcmask 253952
          %327 = vst.msk [vmem:[%s319] sm:$0x1] %vm326, 0.0
        $region48: #{_forward_impl.3} parent=35 // pred_fallthru
          _
        %v328 = vld [vmem:[%s319] sm:$0x1]
        %vm329 = vcmask 261120
        %v330 = vsel %vm329, %v320, 0.0
        %v331 = vsel %vm329, %v321, 0.0
        %v332 = vadd.f32 %v330, %v331
        %v333 = vrot.slane %v332, 4
        %v334 = vadd.f32 %v332, %v333
        %v335 = vrot.slane %v334, 2
        %v336 = vadd.f32 %v334, %v335
        %v337 = vrot.slane %v336, 1
        %v338 = vadd.f32 %v336, %v337
        %v339 = vadd.f32 %v328, %v338
        %vm340 = vcmask 253952
        %341 = vst.msk [vmem:[%s319] sm:$0x1] %vm340, %v339
        %v342 = vld [vmem:[%s2] sm:$0x1]
        %s343 = sld [smem:[#allocation2]]
        %v345 = vlaneseq
        %v346 = vshrl.u32 %v345, 7
        %v347 = vsub.s32 0, %v346
        %v348 = vrot.slane %v342, %v347
        %v350 = vsub.f32 %v320, %v348
        %v351 = vsub.f32 %v321, %v348
        %v352 = vstv %s343
        %v353 = vmul.f32 %v350, %v352
        %v354 = vmul.f32 %v351, %v352
        %v355 = vsel %vm329, %v353, -inf
        %356 = vmax.xlane.f32.xlu0 %v355
        %v357 = vpop.xlane.xlu0 %356
        %v358 = vsel %vm329, %v354, -inf
        %359 = vmax.xlane.f32.xlu0 %v358
        %v360 = vpop.xlane.xlu0 %359
        %v361 = vsub.f32 %v353, %v357
        %v362 = vsub.f32 %v354, %v360
        %v363 = vmul.f32 %v361, 1.442695
        %v364 = vpow.pop %v363
        %v365 = vmul.f32 %v362, 1.442695
        %v366 = vpow.pop %v365
        %v367 = vsel %vm329, %v364, 0.0
        %368 = vadd.xlane.f32.xlu0 %v367
        %v369 = vpop.xlane.xlu0 %368
        %v370 = vsel %vm329, %v366, 0.0
        %371 = vadd.xlane.f32.xlu0 %v370
        %v372 = vpop.xlane.xlu0 %371
        %v373 = vrcp.pop %v369
        %v374 = vrcp.pop %v372
        %v375 = vmul.f32 %v364, %v373
        %v376 = vmul.f32 %v366, %v374
        %v377 = vld [vmem:[%s261] sm:$0xff]
        %v378 = vld [vmem:[%s261 + $0x8] sm:$0xff]
        %s379 = sld [smem:[#allocation2 + $0x1]]
        %v380 = vstv %s379
        %v381 = vmul.f32 %v377, %v380
        %v382 = vmul.f32 %v378, %v380
        %v383 = vsel %vm329, %v381, -inf
        %384 = vmax.xlane.f32.xlu0 %v383
        %v385 = vpop.xlane.xlu0 %384
        %v386 = vsel %vm329, %v382, -inf
        %387 = vmax.xlane.f32.xlu0 %v386
        %v388 = vpop.xlane.xlu0 %387
        %v389 = vsub.f32 %v381, %v385
        %v390 = vsub.f32 %v382, %v388
        %v391 = vmul.f32 %v389, 1.442695
        %v392 = vpow.pop %v391
        %v393 = vmul.f32 %v390, 1.442695
        %v394 = vpow.pop %v393
        %v395 = vsel %vm329, %v392, 0.0
        %396 = vadd.xlane.f32.xlu0 %v395
        %v397 = vpop.xlane.xlu0 %396
        %v398 = vsel %vm329, %v394, 0.0
        %399 = vadd.xlane.f32.xlu0 %v398
        %v400 = vpop.xlane.xlu0 %399
        %v401 = vlog2.pop %v397
        %v402 = vmul.f32 %v401, 0.6931472
        %v403 = vlog2.pop %v400
        %v404 = vmul.f32 %v403, 0.6931472
        %v405 = vsub.f32 %v402, %v389
        %v406 = vsub.f32 %v404, %v390
        %v407 = vmul.f32 %v375, %v405
        %v408 = vmul.f32 %v376, %v406
        %v409 = vsel %vm329, %v407, 0.0
        %410 = vadd.xlane.f32.xlu0 %v409
        %v411 = vpop.xlane.xlu0 %410
        %v412 = vsel %vm329, %v408, 0.0
        %413 = vadd.xlane.f32.xlu0 %v412
        %v414 = vpop.xlane.xlu0 %413
        %vm415 = vcmask 7168
        %416 = vst.msk [vmem:[%s314] sm:$0xff] %vm415, %v411
        %417 = vst.msk [vmem:[%s314 + $0x8] sm:$0xff] %vm415, %v414
        %s418 = sadd.s32 %s25, %s26
        %s419 = smul.u32 2, %s418
        %p420 = scmp.lt.s32.totalorder %s419, 3
        %s421 = scalar_select %p420, %s419, 3
        %s422 = smul.addr %s421, 8
        %s423 = scalar_lea.vmem %s4, %s422
        %p424 = scmp.lt.s32.totalorder %s25, 1
        %s425 = scalar_select %p424, %s25, 1
        %s426 = scalar_lea.vmem %s5, %s425
        // Predicated region
        $region49: #{_forward_impl.3} parent=35 // pred_check
          %p427 = pneg %p151
        $region50: #{_forward_impl.3} parent=35 // pred_check_branch
          %429 = sbr.rel (%p427) target = $region52
        $region51: #{_forward_impl.3} parent=35 // pred_region
          %s430 = sadd.s32 %s25, %s26
          %s431 = smul.u32 2, %s430
        $region52: #{_forward_impl.3} parent=35 // pred_fallthru
          _
        // Predicated region
        $region53: #{_forward_impl.3} parent=35 // pred_check
          %p432 = pneg %p177
        $region54: #{_forward_impl.3} parent=35 // pred_check_branch
          %434 = sbr.rel (%p432) target = $region56
        $region55: #{_forward_impl.3} parent=35 // pred_region
          _
        $region56: #{_forward_impl.3} parent=35 // pred_fallthru
          _
      $region36: #{_forward_impl.3} parent=5 // pred_fallthru
        _
      %p435 = scmp.le.s32.totalorder 2, %s16
      // Predicated region
      $region57: #{_forward_impl.3} parent=5 // pred_check
        %p436 = pneg %p435
      $region58: #{_forward_impl.3} parent=5 // pred_check_branch
        %438 = sbr.rel (%p436) target = $region60
      $region59: #{_forward_impl.3} parent=5 // pred_region
        %s439 = ssub.s32 %s16, 2
        // Predicated region
        $region61: #{_forward_impl.3} parent=59 // pred_check
          %p440 = pneg %p157
        $region62: #{_forward_impl.3} parent=59 // pred_check_branch
          %442 = sbr.rel (%p440) target = $region64
        $region63: #{_forward_impl.3} parent=59 // pred_region
          %s443 = sadd.s32 %s27, %s28
          %s444 = smul.u32 2, %s443
          %p445 = scmp.lt.s32.totalorder %s444, 3
          %s446 = scalar_select %p445, %s444, 3
          %s447 = smul.addr %s446, 8
          %s448 = scalar_lea.vmem %s4, %s447
        $region64: #{_forward_impl.3} parent=59 // pred_fallthru
          _
        // Predicated region
        $region65: #{_forward_impl.3} parent=59 // pred_check
          %p449 = pneg %p183
        $region66: #{_forward_impl.3} parent=59 // pred_check_branch
          %451 = sbr.rel (%p449) target = $region68
        $region67: #{_forward_impl.3} parent=59 // pred_region
          %p452 = scmp.lt.s32.totalorder %s27, 1
          %s453 = scalar_select %p452, %s27, 1
          %s454 = scalar_lea.vmem %s5, %s453
        $region68: #{_forward_impl.3} parent=59 // pred_fallthru
          _
      $region60: #{_forward_impl.3} parent=5 // pred_fallthru
        _
    $region6: #{_forward_impl.3} parent=1 // loop_footer
      %s20 = sadd.s32 1, %s16
    $region7: #{_forward_impl.3} parent=1 // loop_footer_branch
      %15 = sbr.rel target = $region3
    $region8: #{_forward_impl.3} parent=1 // loop_exit
      _
    %455 = vsyncpa [#allocation3], 1
    %s456 = scalar_lea.sflag [#allocation3], 1
    %457 = vsyncpa %s456, 1
    %458 = vsyncpa [#allocation4], 1
    %s459 = scalar_lea.sflag [#allocation4], 1
    %460 = vsyncpa %s459, 1

</llo_original>
